<compile_context>
chip_gen: v6e
topology: v6e:2x2x1
jax: 0.10.0
libtpu: 0.0.40
codegen_flags: <defaults>
</compile_context>

<pallas_src>
import jax
import jax.numpy as jnp
from jax.experimental import pallas as pl
from jax.experimental.pallas import tpu as pltpu

_LANES = 128
_SUBLANES = 8


def _smooth_l1(diff):
    ad = jnp.abs(diff)
    return jnp.where(ad < 1.0, 0.5 * ad * ad, ad - 0.5)


def _sast_loss_kernel(f_score_ref, f_border_ref, f_tvo_ref, f_tco_ref,
                      l_score_ref, l_border_ref, l_mask_ref, l_tvo_ref,
                      l_tco_ref, out_ref, acc_ref):
    s = pl.program_id(1)

    @pl.when(s == 0)
    def _init():
        acc_ref[...] = jnp.zeros_like(acc_ref)

    def ld(ref):
        # DMA happened in native dtype; cast once to f32 for the math.
        return ref[...].astype(jnp.float32)

    fs = ld(f_score_ref)[0]            # (R, 128)
    ls = ld(l_score_ref)[0]            # (R, 128)
    lm = ld(l_mask_ref)[0]             # (R, 128)
    sm = ls * lm                       # score * mask

    lb = ld(l_border_ref)              # (5, R, 128)
    fb = ld(f_border_ref)              # (4, R, 128)
    border_sum = jnp.sum(_smooth_l1(lb[:4] - fb), axis=0)   # (R, 128)

    ltv = ld(l_tvo_ref)                # (9, R, 128)
    ftv = ld(f_tvo_ref)                # (8, R, 128)
    tvo_sum = jnp.sum(_smooth_l1(ltv[:8] - ftv), axis=0)

    ltc = ld(l_tco_ref)                # (3, R, 128)
    ftc = ld(f_tco_ref)                # (2, R, 128)
    tco_sum = jnp.sum(_smooth_l1(ltc[:2] - ftc), axis=0)

    # Elementwise partial-sum accumulation (no per-step XLU reduction).
    acc_ref[0] += fs * sm                    # intersection
    acc_ref[1] += fs * lm                    # sum(f_score * mask)
    acc_ref[2] += sm                         # sum(score * mask)
    acc_ref[3] += sm * lb[4] * border_sum    # border numerator
    acc_ref[4] += sm * ltv[8] * tvo_sum      # tvo numerator
    acc_ref[5] += sm * ltc[2] * tco_sum      # tco numerator
    # rows 6, 7 stay zero (sublane-aligned padding of the accumulator)

    @pl.when(s == pl.num_programs(1) - 1)
    def _finalize():
        # Single sublane reduction per batch element -> (8, 128) partials.
        out_ref[...] = jnp.sum(acc_ref[...], axis=1)


def _pick_row_tile(rows, target=128):
    """Largest multiple of 8 <= target that divides `rows` (rows % 8 == 0)."""
    if rows <= target:
        return rows
    best = 8
    t = 8
    while t <= target:
        if rows % t == 0:
            best = t
        t += 8
    return best


def sast_loss(predicts, labels):
    f_score = predicts['f_score']
    f_border = predicts['f_border']
    f_tvo = predicts['f_tvo']
    f_tco = predicts['f_tco']
    l_score, l_border, l_mask, l_tvo, l_tco = labels[1:6]

    N, _, H, W = f_score.shape
    HW = H * W
    pad_unit = _SUBLANES * _LANES
    HW_pad = ((HW + pad_unit - 1) // pad_unit) * pad_unit
    rows = HW_pad // _LANES            # multiple of 8

    def prep(x):
        c = x.shape[1]
        x = x.reshape(N, c, HW)
        if HW_pad != HW:
            x = jnp.pad(x, ((0, 0), (0, 0), (0, HW_pad - HW)))
        return x.reshape(N, c, rows, _LANES)   # native dtype, no upcast

    args = [prep(a) for a in (f_score, f_border, f_tvo, f_tco,
                              l_score, l_border, l_mask, l_tvo, l_tco)]

    row_tile = _pick_row_tile(rows)
    n_spatial = rows // row_tile

    in_specs = [
        pl.BlockSpec((None, a.shape[1], row_tile, _LANES),
                     lambda n, s: (n, 0, s, 0))
        for a in args
    ]
    out_spec = pl.BlockSpec((None, 8, _LANES), lambda n, s: (n, 0, 0))

    bytes_accessed = int(sum(int(a.size) * a.dtype.itemsize for a in args)
                         + N * 8 * _LANES * 4)
    cost = pl.CostEstimate(flops=int(160 * N * HW_pad), transcendentals=0,
                           bytes_accessed=bytes_accessed)

    partials = pl.pallas_call(
        _sast_loss_kernel,
        out_shape=jax.ShapeDtypeStruct((N, 8, _LANES), jnp.float32),
        grid_spec=pltpu.PrefetchScalarGridSpec(
            num_scalar_prefetch=0,
            grid=(N, n_spatial),
            in_specs=in_specs,
            out_specs=out_spec,
            scratch_shapes=[pltpu.VMEM((8, row_tile, _LANES), jnp.float32)],
        ),
        compiler_params=pltpu.CompilerParams(
            dimension_semantics=("parallel", "arbitrary"),
            vmem_limit_bytes=32 * 1024 * 1024,
        ),
        cost_estimate=cost,
    )(*args)

    # Tiny global combine + scalar loss math outside the kernel.
    sums = jnp.sum(partials, axis=(0, 2))          # (8,)
    inter = sums[0]
    f_mask_sum = sums[1]
    score_mask_sum = sums[2]
    border_num, tvo_num, tco_num = sums[3], sums[4], sums[5]

    union = f_mask_sum + score_mask_sum
    score_loss = 1.0 - 2.0 * inter / (union + 1e-5)
    border_loss = border_num / (4.0 * score_mask_sum + 1e-5)
    tvo_loss = tvo_num / (8.0 * score_mask_sum + 1e-5)
    tco_loss = tco_num / (2.0 * score_mask_sum + 1e-5)
    total = score_loss * 1.0 + border_loss * 1.0 + tvo_loss * 1.5 + tco_loss * 1.5
    return {'loss': total, 'score_loss': score_loss, 'border_loss': border_loss,
            'tvo_loss': tvo_loss, 'tco_loss': tco_loss}


def sast_loss_ref(predicts, labels):
    """Pure-JAX reference mirroring the PyTorch module (computed in f32)."""
    f32 = lambda x: x.astype(jnp.float32)
    f_score = f32(predicts['f_score'])
    f_border = f32(predicts['f_border'])
    f_tvo = f32(predicts['f_tvo'])
    f_tco = f32(predicts['f_tco'])
    l_score, l_border, l_mask, l_tvo, l_tco = [f32(x) for x in labels[1:6]]

    inter = jnp.sum(f_score * l_score * l_mask)
    union = jnp.sum(f_score * l_mask) + jnp.sum(l_score * l_mask)
    score_loss = 1.0 - 2.0 * inter / (union + 1e-5)

    def geo_loss(l_full, f_pred, n):
        l_split = l_full[:, :n]
        l_norm = l_full[:, n:n + 1]
        d = jnp.abs(l_split - f_pred)
        sign = (d < 1.0).astype(jnp.float32)
        in_loss = 0.5 * d * d * sign + (d - 0.5) * (1.0 - sign)
        out_loss = l_norm * in_loss
        score = jnp.broadcast_to(l_score, out_loss.shape)
        mask = jnp.broadcast_to(l_mask, out_loss.shape)
        return jnp.sum(out_loss * score * mask) / (jnp.sum(score * mask) + 1e-5)

    border_loss = geo_loss(l_border, f_border, 4)
    tvo_loss = geo_loss(l_tvo, f_tvo, 8)
    tco_loss = geo_loss(l_tco, f_tco, 2)
    total = score_loss * 1.0 + border_loss * 1.0 + tvo_loss * 1.5 + tco_loss * 1.5
    return {'loss': total, 'score_loss': score_loss, 'border_loss': border_loss,
            'tvo_loss': tvo_loss, 'tco_loss': tco_loss}


if __name__ == "__main__":
    N, H, W = 2, 16, 16
    key = jax.random.PRNGKey(0)
    ks = jax.random.split(key, 9)

    # Network outputs in bf16 (native training dtype), labels in f32.
    predicts = {
        'f_score': jax.nn.sigmoid(
            jax.random.normal(ks[0], (N, 1, H, W), jnp.float32)).astype(jnp.bfloat16),
        'f_border': jax.random.normal(ks[1], (N, 4, H, W), jnp.float32).astype(jnp.bfloat16),
        'f_tvo': jax.random.normal(ks[2], (N, 8, H, W), jnp.float32).astype(jnp.bfloat16),
        'f_tco': jax.random.normal(ks[3], (N, 2, H, W), jnp.float32).astype(jnp.bfloat16),
    }
    labels = [
        None,  # labels[0] unused by the loss
        jax.random.bernoulli(ks[4], 0.5, (N, 1, H, W)).astype(jnp.float32),  # l_score
        jax.random.normal(ks[5], (N, 5, H, W), jnp.float32),                 # l_border
        jax.random.bernoulli(ks[6], 0.8, (N, 1, H, W)).astype(jnp.float32),  # l_mask
        jax.random.normal(ks[7], (N, 9, H, W), jnp.float32),                 # l_tvo
        jax.random.normal(ks[8], (N, 3, H, W), jnp.float32),                 # l_tco
    ]

    out = sast_loss(predicts, labels)
    out = jax.tree_util.tree_map(lambda a: a.block_until_ready(), out)
    ref = sast_loss_ref(predicts, labels)

    for k in ('loss', 'score_loss', 'border_loss', 'tvo_loss', 'tco_loss'):
        assert jnp.allclose(out[k], ref[k], rtol=1e-4, atol=1e-5), (
            k, float(out[k]), float(ref[k]))

    print("KERNEL_OK")
</pallas_src>

<mosaic_0001>
module attributes {stable_mosaic.version = 11 : i64} {
  func.func @_sast_loss_kernel(%arg0: i32, %arg1: i32, %arg2: memref<1x1x8x128xbf16, #tpu.memory_space<vmem>>, %arg3: memref<1x4x8x128xbf16, #tpu.memory_space<vmem>>, %arg4: memref<1x8x8x128xbf16, #tpu.memory_space<vmem>>, %arg5: memref<1x2x8x128xbf16, #tpu.memory_space<vmem>>, %arg6: memref<1x1x8x128xf32, #tpu.memory_space<vmem>>, %arg7: memref<1x5x8x128xf32, #tpu.memory_space<vmem>>, %arg8: memref<1x1x8x128xf32, #tpu.memory_space<vmem>>, %arg9: memref<1x9x8x128xf32, #tpu.memory_space<vmem>>, %arg10: memref<1x3x8x128xf32, #tpu.memory_space<vmem>>, %arg11: memref<1x8x128xf32, #tpu.memory_space<vmem>>, %arg12: memref<8x8x128xf32, #tpu.memory_space<vmem>>) attributes {dimension_semantics = [#tpu.dimension_semantics<parallel>, #tpu.dimension_semantics<arbitrary>], iteration_bounds = array<i64: 2, 1>, scalar_prefetch = 0 : i64, scratch_operands = 1 : i64, tpu.core_type = #tpu.core_type<tc>, window_params = [{transform_indices = @transform_0, window_bounds = array<i64: 1, 1, 8, 128>}, {transform_indices = @transform_1, window_bounds = array<i64: 1, 4, 8, 128>}, {transform_indices = @transform_2, window_bounds = array<i64: 1, 8, 8, 128>}, {transform_indices = @transform_3, window_bounds = array<i64: 1, 2, 8, 128>}, {transform_indices = @transform_4, window_bounds = array<i64: 1, 1, 8, 128>}, {transform_indices = @transform_5, window_bounds = array<i64: 1, 5, 8, 128>}, {transform_indices = @transform_6, window_bounds = array<i64: 1, 1, 8, 128>}, {transform_indices = @transform_7, window_bounds = array<i64: 1, 9, 8, 128>}, {transform_indices = @transform_8, window_bounds = array<i64: 1, 3, 8, 128>}, {transform_indices = @transform_9, window_bounds = array<i64: 1, 8, 128>}]} {
    %c0_i32 = arith.constant 0 : i32
    %0 = arith.cmpi eq, %arg1, %c0_i32 : i32
    %1 = arith.extui %0 : i1 to i32
    %c0_i32_0 = arith.constant 0 : i32
    %2 = arith.cmpi ne, %1, %c0_i32_0 : i32
    scf.if %2 {
      %cst_80 = arith.constant 0.000000e+00 : f32
      %118 = vector.broadcast %cst_80 : f32 to vector<8x8x128xf32>
      %c0_81 = arith.constant 0 : index
      %c0_82 = arith.constant 0 : index
      %c0_83 = arith.constant 0 : index
      %119 = vector.load %arg12[%c0_81, %c0_82, %c0_83] : memref<8x8x128xf32, #tpu.memory_space<vmem>>, vector<8x8x128xf32>
      tpu.vector_store %arg12[%c0_81, %c0_82, %c0_83], %118 {strides = array<i32>} : memref<8x8x128xf32, #tpu.memory_space<vmem>>, vector<8x8x128xf32>,
    } else {
    }
    %c0 = arith.constant 0 : index
    %c0_1 = arith.constant 0 : index
    %c0_2 = arith.constant 0 : index
    %c0_3 = arith.constant 0 : index
    %3 = vector.load %arg2[%c0, %c0_1, %c0_2, %c0_3] : memref<1x1x8x128xbf16, #tpu.memory_space<vmem>>, vector<1x1x8x128xbf16>
    %4 = vector.shape_cast %3 : vector<1x1x8x128xbf16> to vector<1x8x128xbf16>
    %5 = arith.extf %4 : vector<1x8x128xbf16> to vector<1x8x128xf32>
    %6 = vector.shape_cast %5 : vector<1x8x128xf32> to vector<8x128xf32>
    %c0_4 = arith.constant 0 : index
    %c0_5 = arith.constant 0 : index
    %c0_6 = arith.constant 0 : index
    %c0_7 = arith.constant 0 : index
    %7 = vector.load %arg6[%c0_4, %c0_5, %c0_6, %c0_7] : memref<1x1x8x128xf32, #tpu.memory_space<vmem>>, vector<1x1x8x128xf32>
    %8 = vector.shape_cast %7 : vector<1x1x8x128xf32> to vector<1x8x128xf32>
    %9 = vector.shape_cast %8 : vector<1x8x128xf32> to vector<8x128xf32>
    %c0_8 = arith.constant 0 : index
    %c0_9 = arith.constant 0 : index
    %c0_10 = arith.constant 0 : index
    %c0_11 = arith.constant 0 : index
    %10 = vector.load %arg8[%c0_8, %c0_9, %c0_10, %c0_11] : memref<1x1x8x128xf32, #tpu.memory_space<vmem>>, vector<1x1x8x128xf32>
    %11 = vector.shape_cast %10 : vector<1x1x8x128xf32> to vector<1x8x128xf32>
    %12 = vector.shape_cast %11 : vector<1x8x128xf32> to vector<8x128xf32>
    %13 = arith.mulf %9, %12 : vector<8x128xf32>
    %c0_12 = arith.constant 0 : index
    %c0_13 = arith.constant 0 : index
    %c0_14 = arith.constant 0 : index
    %c0_15 = arith.constant 0 : index
    %14 = vector.load %arg7[%c0_12, %c0_13, %c0_14, %c0_15] : memref<1x5x8x128xf32, #tpu.memory_space<vmem>>, vector<1x5x8x128xf32>
    %15 = vector.shape_cast %14 : vector<1x5x8x128xf32> to vector<5x8x128xf32>
    %c0_16 = arith.constant 0 : index
    %c0_17 = arith.constant 0 : index
    %c0_18 = arith.constant 0 : index
    %c0_19 = arith.constant 0 : index
    %16 = vector.load %arg3[%c0_16, %c0_17, %c0_18, %c0_19] : memref<1x4x8x128xbf16, #tpu.memory_space<vmem>>, vector<1x4x8x128xbf16>
    %17 = vector.shape_cast %16 : vector<1x4x8x128xbf16> to vector<4x8x128xbf16>
    %18 = arith.extf %17 : vector<4x8x128xbf16> to vector<4x8x128xf32>
    %19 = vector.extract_strided_slice %15 {offsets = [0, 0, 0], sizes = [4, 8, 128], strides = [1, 1, 1]} : vector<5x8x128xf32> to vector<4x8x128xf32>
    %20 = arith.subf %19, %18 : vector<4x8x128xf32>
    %21 = math.absf %20 : vector<4x8x128xf32>
    %cst = arith.constant 1.000000e+00 : f32
    %22 = vector.broadcast %cst : f32 to vector<4x8x128xf32>
    %23 = arith.cmpf olt, %21, %22 : vector<4x8x128xf32>
    %cst_20 = arith.constant 5.000000e-01 : f32
    %24 = vector.broadcast %cst_20 : f32 to vector<4x8x128xf32>
    %25 = arith.mulf %24, %21 : vector<4x8x128xf32>
    %26 = arith.mulf %25, %21 : vector<4x8x128xf32>
    %cst_21 = arith.constant 5.000000e-01 : f32
    %27 = vector.broadcast %cst_21 : f32 to vector<4x8x128xf32>
    %28 = arith.subf %21, %27 : vector<4x8x128xf32>
    %29 = arith.select %23, %26, %28 : vector<4x8x128xi1>, vector<4x8x128xf32>
    %cst_22 = arith.constant dense<0.000000e+00> : vector<8x128xf32>
    %30 = vector.multi_reduction <add>, %29, %cst_22 [0] : vector<4x8x128xf32> to vector<8x128xf32>
    %c0_23 = arith.constant 0 : index
    %c0_24 = arith.constant 0 : index
    %c0_25 = arith.constant 0 : index
    %c0_26 = arith.constant 0 : index
    %31 = vector.load %arg9[%c0_23, %c0_24, %c0_25, %c0_26] : memref<1x9x8x128xf32, #tpu.memory_space<vmem>>, vector<1x9x8x128xf32>
    %32 = vector.shape_cast %31 : vector<1x9x8x128xf32> to vector<9x8x128xf32>
    %c0_27 = arith.constant 0 : index
    %c0_28 = arith.constant 0 : index
    %c0_29 = arith.constant 0 : index
    %c0_30 = arith.constant 0 : index
    %33 = vector.load %arg4[%c0_27, %c0_28, %c0_29, %c0_30] : memref<1x8x8x128xbf16, #tpu.memory_space<vmem>>, vector<1x8x8x128xbf16>
    %34 = vector.shape_cast %33 : vector<1x8x8x128xbf16> to vector<8x8x128xbf16>
    %35 = arith.extf %34 : vector<8x8x128xbf16> to vector<8x8x128xf32>
    %36 = vector.extract_strided_slice %32 {offsets = [0, 0, 0], sizes = [8, 8, 128], strides = [1, 1, 1]} : vector<9x8x128xf32> to vector<8x8x128xf32>
    %37 = arith.subf %36, %35 : vector<8x8x128xf32>
    %38 = math.absf %37 : vector<8x8x128xf32>
    %cst_31 = arith.constant 1.000000e+00 : f32
    %39 = vector.broadcast %cst_31 : f32 to vector<8x8x128xf32>
    %40 = arith.cmpf olt, %38, %39 : vector<8x8x128xf32>
    %cst_32 = arith.constant 5.000000e-01 : f32
    %41 = vector.broadcast %cst_32 : f32 to vector<8x8x128xf32>
    %42 = arith.mulf %41, %38 : vector<8x8x128xf32>
    %43 = arith.mulf %42, %38 : vector<8x8x128xf32>
    %cst_33 = arith.constant 5.000000e-01 : f32
    %44 = vector.broadcast %cst_33 : f32 to vector<8x8x128xf32>
    %45 = arith.subf %38, %44 : vector<8x8x128xf32>
    %46 = arith.select %40, %43, %45 : vector<8x8x128xi1>, vector<8x8x128xf32>
    %cst_34 = arith.constant dense<0.000000e+00> : vector<8x128xf32>
    %47 = vector.multi_reduction <add>, %46, %cst_34 [0] : vector<8x8x128xf32> to vector<8x128xf32>
    %c0_35 = arith.constant 0 : index
    %c0_36 = arith.constant 0 : index
    %c0_37 = arith.constant 0 : index
    %c0_38 = arith.constant 0 : index
    %48 = vector.load %arg10[%c0_35, %c0_36, %c0_37, %c0_38] : memref<1x3x8x128xf32, #tpu.memory_space<vmem>>, vector<1x3x8x128xf32>
    %49 = vector.shape_cast %48 : vector<1x3x8x128xf32> to vector<3x8x128xf32>
    %c0_39 = arith.constant 0 : index
    %c0_40 = arith.constant 0 : index
    %c0_41 = arith.constant 0 : index
    %c0_42 = arith.constant 0 : index
    %50 = vector.load %arg5[%c0_39, %c0_40, %c0_41, %c0_42] : memref<1x2x8x128xbf16, #tpu.memory_space<vmem>>, vector<1x2x8x128xbf16>
    %51 = vector.shape_cast %50 : vector<1x2x8x128xbf16> to vector<2x8x128xbf16>
    %52 = arith.extf %51 : vector<2x8x128xbf16> to vector<2x8x128xf32>
    %53 = vector.extract_strided_slice %49 {offsets = [0, 0, 0], sizes = [2, 8, 128], strides = [1, 1, 1]} : vector<3x8x128xf32> to vector<2x8x128xf32>
    %54 = arith.subf %53, %52 : vector<2x8x128xf32>
    %55 = math.absf %54 : vector<2x8x128xf32>
    %cst_43 = arith.constant 1.000000e+00 : f32
    %56 = vector.broadcast %cst_43 : f32 to vector<2x8x128xf32>
    %57 = arith.cmpf olt, %55, %56 : vector<2x8x128xf32>
    %cst_44 = arith.constant 5.000000e-01 : f32
    %58 = vector.broadcast %cst_44 : f32 to vector<2x8x128xf32>
    %59 = arith.mulf %58, %55 : vector<2x8x128xf32>
    %60 = arith.mulf %59, %55 : vector<2x8x128xf32>
    %cst_45 = arith.constant 5.000000e-01 : f32
    %61 = vector.broadcast %cst_45 : f32 to vector<2x8x128xf32>
    %62 = arith.subf %55, %61 : vector<2x8x128xf32>
    %63 = arith.select %57, %60, %62 : vector<2x8x128xi1>, vector<2x8x128xf32>
    %cst_46 = arith.constant dense<0.000000e+00> : vector<8x128xf32>
    %64 = vector.multi_reduction <add>, %63, %cst_46 [0] : vector<2x8x128xf32> to vector<8x128xf32>
    %c0_47 = arith.constant 0 : index
    %c0_48 = arith.constant 0 : index
    %c0_49 = arith.constant 0 : index
    %65 = vector.load %arg12[%c0_47, %c0_48, %c0_49] : memref<8x8x128xf32, #tpu.memory_space<vmem>>, vector<1x8x128xf32>
    %66 = vector.shape_cast %65 : vector<1x8x128xf32> to vector<8x128xf32>
    %67 = arith.mulf %6, %13 : vector<8x128xf32>
    %68 = arith.addf %66, %67 : vector<8x128xf32>
    %c0_50 = arith.constant 0 : index
    %c0_51 = arith.constant 0 : index
    %c0_52 = arith.constant 0 : index
    %69 = vector.load %arg12[%c0_50, %c0_51, %c0_52] : memref<8x8x128xf32, #tpu.memory_space<vmem>>, vector<1x8x128xf32>
    %70 = vector.shape_cast %69 : vector<1x8x128xf32> to vector<8x128xf32>
    %71 = vector.shape_cast %68 : vector<8x128xf32> to vector<1x8x128xf32>
    tpu.vector_store %arg12[%c0_50, %c0_51, %c0_52], %71 {strides = array<i32>} : memref<8x8x128xf32, #tpu.memory_space<vmem>>, vector<1x8x128xf32>,
    %c1 = arith.constant 1 : index
    %c0_53 = arith.constant 0 : index
    %c0_54 = arith.constant 0 : index
    %72 = vector.load %arg12[%c1, %c0_53, %c0_54] : memref<8x8x128xf32, #tpu.memory_space<vmem>>, vector<1x8x128xf32>
    %73 = vector.shape_cast %72 : vector<1x8x128xf32> to vector<8x128xf32>
    %74 = arith.mulf %6, %12 : vector<8x128xf32>
    %75 = arith.addf %73, %74 : vector<8x128xf32>
    %c1_55 = arith.constant 1 : index
    %c0_56 = arith.constant 0 : index
    %c0_57 = arith.constant 0 : index
    %76 = vector.load %arg12[%c1_55, %c0_56, %c0_57] : memref<8x8x128xf32, #tpu.memory_space<vmem>>, vector<1x8x128xf32>
    %77 = vector.shape_cast %76 : vector<1x8x128xf32> to vector<8x128xf32>
    %78 = vector.shape_cast %75 : vector<8x128xf32> to vector<1x8x128xf32>
    tpu.vector_store %arg12[%c1_55, %c0_56, %c0_57], %78 {strides = array<i32>} : memref<8x8x128xf32, #tpu.memory_space<vmem>>, vector<1x8x128xf32>,
    %c2 = arith.constant 2 : index
    %c0_58 = arith.constant 0 : index
    %c0_59 = arith.constant 0 : index
    %79 = vector.load %arg12[%c2, %c0_58, %c0_59] : memref<8x8x128xf32, #tpu.memory_space<vmem>>, vector<1x8x128xf32>
    %80 = vector.shape_cast %79 : vector<1x8x128xf32> to vector<8x128xf32>
    %81 = arith.addf %80, %13 : vector<8x128xf32>
    %c2_60 = arith.constant 2 : index
    %c0_61 = arith.constant 0 : index
    %c0_62 = arith.constant 0 : index
    %82 = vector.load %arg12[%c2_60, %c0_61, %c0_62] : memref<8x8x128xf32, #tpu.memory_space<vmem>>, vector<1x8x128xf32>
    %83 = vector.shape_cast %82 : vector<1x8x128xf32> to vector<8x128xf32>
    %84 = vector.shape_cast %81 : vector<8x128xf32> to vector<1x8x128xf32>
    tpu.vector_store %arg12[%c2_60, %c0_61, %c0_62], %84 {strides = array<i32>} : memref<8x8x128xf32, #tpu.memory_space<vmem>>, vector<1x8x128xf32>,
    %c3 = arith.constant 3 : index
    %c0_63 = arith.constant 0 : index
    %c0_64 = arith.constant 0 : index
    %85 = vector.load %arg12[%c3, %c0_63, %c0_64] : memref<8x8x128xf32, #tpu.memory_space<vmem>>, vector<1x8x128xf32>
    %86 = vector.shape_cast %85 : vector<1x8x128xf32> to vector<8x128xf32>
    %87 = vector.extract_strided_slice %15 {offsets = [4, 0, 0], sizes = [1, 8, 128], strides = [1, 1, 1]} : vector<5x8x128xf32> to vector<1x8x128xf32>
    %88 = vector.shape_cast %87 : vector<1x8x128xf32> to vector<8x128xf32>
    %89 = arith.mulf %13, %88 : vector<8x128xf32>
    %90 = arith.mulf %89, %30 : vector<8x128xf32>
    %91 = arith.addf %86, %90 : vector<8x128xf32>
    %c3_65 = arith.constant 3 : index
    %c0_66 = arith.constant 0 : index
    %c0_67 = arith.constant 0 : index
    %92 = vector.load %arg12[%c3_65, %c0_66, %c0_67] : memref<8x8x128xf32, #tpu.memory_space<vmem>>, vector<1x8x128xf32>
    %93 = vector.shape_cast %92 : vector<1x8x128xf32> to vector<8x128xf32>
    %94 = vector.shape_cast %91 : vector<8x128xf32> to vector<1x8x128xf32>
    tpu.vector_store %arg12[%c3_65, %c0_66, %c0_67], %94 {strides = array<i32>} : memref<8x8x128xf32, #tpu.memory_space<vmem>>, vector<1x8x128xf32>,
    %c4 = arith.constant 4 : index
    %c0_68 = arith.constant 0 : index
    %c0_69 = arith.constant 0 : index
    %95 = vector.load %arg12[%c4, %c0_68, %c0_69] : memref<8x8x128xf32, #tpu.memory_space<vmem>>, vector<1x8x128xf32>
    %96 = vector.shape_cast %95 : vector<1x8x128xf32> to vector<8x128xf32>
    %97 = vector.extract_strided_slice %32 {offsets = [8, 0, 0], sizes = [1, 8, 128], strides = [1, 1, 1]} : vector<9x8x128xf32> to vector<1x8x128xf32>
    %98 = vector.shape_cast %97 : vector<1x8x128xf32> to vector<8x128xf32>
    %99 = arith.mulf %13, %98 : vector<8x128xf32>
    %100 = arith.mulf %99, %47 : vector<8x128xf32>
    %101 = arith.addf %96, %100 : vector<8x128xf32>
    %c4_70 = arith.constant 4 : index
    %c0_71 = arith.constant 0 : index
    %c0_72 = arith.constant 0 : index
    %102 = vector.load %arg12[%c4_70, %c0_71, %c0_72] : memref<8x8x128xf32, #tpu.memory_space<vmem>>, vector<1x8x128xf32>
    %103 = vector.shape_cast %102 : vector<1x8x128xf32> to vector<8x128xf32>
    %104 = vector.shape_cast %101 : vector<8x128xf32> to vector<1x8x128xf32>
    tpu.vector_store %arg12[%c4_70, %c0_71, %c0_72], %104 {strides = array<i32>} : memref<8x8x128xf32, #tpu.memory_space<vmem>>, vector<1x8x128xf32>,
    %c5 = arith.constant 5 : index
    %c0_73 = arith.constant 0 : index
    %c0_74 = arith.constant 0 : index
    %105 = vector.load %arg12[%c5, %c0_73, %c0_74] : memref<8x8x128xf32, #tpu.memory_space<vmem>>, vector<1x8x128xf32>
    %106 = vector.shape_cast %105 : vector<1x8x128xf32> to vector<8x128xf32>
    %107 = vector.extract_strided_slice %49 {offsets = [2, 0, 0], sizes = [1, 8, 128], strides = [1, 1, 1]} : vector<3x8x128xf32> to vector<1x8x128xf32>
    %108 = vector.shape_cast %107 : vector<1x8x128xf32> to vector<8x128xf32>
    %109 = arith.mulf %13, %108 : vector<8x128xf32>
    %110 = arith.mulf %109, %64 : vector<8x128xf32>
    %111 = arith.addf %106, %110 : vector<8x128xf32>
    %c5_75 = arith.constant 5 : index
    %c0_76 = arith.constant 0 : index
    %c0_77 = arith.constant 0 : index
    %112 = vector.load %arg12[%c5_75, %c0_76, %c0_77] : memref<8x8x128xf32, #tpu.memory_space<vmem>>, vector<1x8x128xf32>
    %113 = vector.shape_cast %112 : vector<1x8x128xf32> to vector<8x128xf32>
    %114 = vector.shape_cast %111 : vector<8x128xf32> to vector<1x8x128xf32>
    tpu.vector_store %arg12[%c5_75, %c0_76, %c0_77], %114 {strides = array<i32>} : memref<8x8x128xf32, #tpu.memory_space<vmem>>, vector<1x8x128xf32>,
    %c0_i32_78 = arith.constant 0 : i32
    %115 = arith.cmpi eq, %arg1, %c0_i32_78 : i32
    %116 = arith.extui %115 : i1 to i32
    %c0_i32_79 = arith.constant 0 : i32
    %117 = arith.cmpi ne, %116, %c0_i32_79 : i32
    scf.if %117 {
      %c0_80 = arith.constant 0 : index
      %c0_81 = arith.constant 0 : index
      %c0_82 = arith.constant 0 : index
      %118 = vector.load %arg12[%c0_80, %c0_81, %c0_82] : memref<8x8x128xf32, #tpu.memory_space<vmem>>, vector<8x8x128xf32>
      %cst_83 = arith.constant dense<0.000000e+00> : vector<8x128xf32>
      %119 = vector.multi_reduction <add>, %118, %cst_83 [1] : vector<8x8x128xf32> to vector<8x128xf32>
      %c0_84 = arith.constant 0 : index
      %c0_85 = arith.constant 0 : index
      %c0_86 = arith.constant 0 : index
      %120 = vector.load %arg11[%c0_84, %c0_85, %c0_86] : memref<1x8x128xf32, #tpu.memory_space<vmem>>, vector<1x8x128xf32>
      %121 = vector.shape_cast %120 : vector<1x8x128xf32> to vector<8x128xf32>
      %122 = vector.shape_cast %119 : vector<8x128xf32> to vector<1x8x128xf32>
      tpu.vector_store %arg11[%c0_84, %c0_85, %c0_86], %122 {strides = array<i32>} : memref<1x8x128xf32, #tpu.memory_space<vmem>>, vector<1x8x128xf32>,
    } else {
    }
    return
  }
  func.func @transform_0(%arg0: i32, %arg1: i32) -> (i32, i32, i32, i32) {
    %c0_i32 = arith.constant 0 : i32
    %c0_i32_0 = arith.constant 0 : i32
    %c0_i32_1 = arith.constant 0 : i32
    return %arg0, %c0_i32, %arg1, %c0_i32_0 : i32, i32, i32, i32
  }
  func.func @transform_1(%arg0: i32, %arg1: i32) -> (i32, i32, i32, i32) {
    %c0_i32 = arith.constant 0 : i32
    %c0_i32_0 = arith.constant 0 : i32
    %c0_i32_1 = arith.constant 0 : i32
    return %arg0, %c0_i32, %arg1, %c0_i32_0 : i32, i32, i32, i32
  }
  func.func @transform_2(%arg0: i32, %arg1: i32) -> (i32, i32, i32, i32) {
    %c0_i32 = arith.constant 0 : i32
    %c0_i32_0 = arith.constant 0 : i32
    %c0_i32_1 = arith.constant 0 : i32
    return %arg0, %c0_i32, %arg1, %c0_i32_0 : i32, i32, i32, i32
  }
  func.func @transform_3(%arg0: i32, %arg1: i32) -> (i32, i32, i32, i32) {
    %c0_i32 = arith.constant 0 : i32
    %c0_i32_0 = arith.constant 0 : i32
    %c0_i32_1 = arith.constant 0 : i32
    return %arg0, %c0_i32, %arg1, %c0_i32_0 : i32, i32, i32, i32
  }
  func.func @transform_4(%arg0: i32, %arg1: i32) -> (i32, i32, i32, i32) {
    %c0_i32 = arith.constant 0 : i32
    %c0_i32_0 = arith.constant 0 : i32
    %c0_i32_1 = arith.constant 0 : i32
    return %arg0, %c0_i32, %arg1, %c0_i32_0 : i32, i32, i32, i32
  }
  func.func @transform_5(%arg0: i32, %arg1: i32) -> (i32, i32, i32, i32) {
    %c0_i32 = arith.constant 0 : i32
    %c0_i32_0 = arith.constant 0 : i32
    %c0_i32_1 = arith.constant 0 : i32
    return %arg0, %c0_i32, %arg1, %c0_i32_0 : i32, i32, i32, i32
  }
  func.func @transform_6(%arg0: i32, %arg1: i32) -> (i32, i32, i32, i32) {
    %c0_i32 = arith.constant 0 : i32
    %c0_i32_0 = arith.constant 0 : i32
    %c0_i32_1 = arith.constant 0 : i32
    return %arg0, %c0_i32, %arg1, %c0_i32_0 : i32, i32, i32, i32
  }
  func.func @transform_7(%arg0: i32, %arg1: i32) -> (i32, i32, i32, i32) {
    %c0_i32 = arith.constant 0 : i32
    %c0_i32_0 = arith.constant 0 : i32
    %c0_i32_1 = arith.constant 0 : i32
    return %arg0, %c0_i32, %arg1, %c0_i32_0 : i32, i32, i32, i32
  }
  func.func @transform_8(%arg0: i32, %arg1: i32) -> (i32, i32, i32, i32) {
    %c0_i32 = arith.constant 0 : i32
    %c0_i32_0 = arith.constant 0 : i32
    %c0_i32_1 = arith.constant 0 : i32
    return %arg0, %c0_i32, %arg1, %c0_i32_0 : i32, i32, i32, i32
  }
  func.func @transform_9(%arg0: i32, %arg1: i32) -> (i32, i32, i32) {
    %c0_i32 = arith.constant 0 : i32
    %c0_i32_0 = arith.constant 0 : i32
    %c0_i32_1 = arith.constant 0 : i32
    return %arg0, %c0_i32, %c0_i32_0 : i32, i32, i32
  }
}

</mosaic_0001>

<llo_original>
// kernel: tpu_custom_call.1
$region0: #{tpu_custom_call.1}
  #allocation0 [shape = 'u32[]', space=smem, size = 0x4, offset = 0x4, fixed_abs, tag = 'smem constant byte address 0x4 - core index']
  #allocation1 [shape = 'u32[144,128]{1,0:T(1,128)}', space=vmem, size = 0x12000, scoped, tag = 'internal scratch']
  #allocation2 [shape = 'f32[8,8,128]{2,1,0:T(8,128)}', space=vmem, size = 0x8000, scoped, tag = 'scratch operand']
  %s0 = inlined_call_operand.hbm [shape: bf16[2,1,8,128], index: 0, kind: input, shape index: {}]
  %s1 = inlined_call_operand.hbm [shape: bf16[2,4,8,128], index: 1, kind: input, shape index: {}]
  %s2 = inlined_call_operand.hbm [shape: bf16[2,8,8,128], index: 2, kind: input, shape index: {}]
  %s3 = inlined_call_operand.hbm [shape: bf16[2,2,8,128], index: 3, kind: input, shape index: {}]
  %s4 = inlined_call_operand.hbm [shape: f32[2,1,8,128], index: 4, kind: input, shape index: {}]
  %s5 = inlined_call_operand.hbm [shape: f32[2,5,8,128], index: 5, kind: input, shape index: {}]
  %s6 = inlined_call_operand.hbm [shape: f32[2,1,8,128], index: 6, kind: input, shape index: {}]
  %s7 = inlined_call_operand.hbm [shape: f32[2,9,8,128], index: 7, kind: input, shape index: {}]
  %s8 = inlined_call_operand.hbm [shape: f32[2,3,8,128], index: 8, kind: input, shape index: {}]
  %s9 = inlined_call_operand.hbm [shape: f32[2,8,128], index: 9, kind: output, shape index: {}]
  %s10 = sld [smem:[#allocation0]]
  $region113: #{tpu_custom_call.1} parent=0
    _
  %s12 = ssub.s32 1, %s10
  %s13 = scalar_select 0, %s12, %s10
  $region1: #{tpu_custom_call.1} parent=0
    #allocation3 [shape = 'u8[4096]{0}', space=vmem, size = 0x1000, scoped, tag = 'input window, operand 0']
    #allocation4 [shape = 's32[2]{0}', space=sflag, size = 0x8, scoped, tag = 'scoped memory for tpu_custom_call.1']
    #allocation5 [shape = 's32[2]{0}', space=sflag, size = 0x8, scoped, tag = 'scoped memory for tpu_custom_call.1']
    #allocation6 [shape = 'u8[16384]{0}', space=vmem, size = 0x4000, scoped, tag = 'input window, operand 1']
    #allocation7 [shape = 's32[2]{0}', space=sflag, size = 0x8, scoped, tag = 'scoped memory for tpu_custom_call.1']
    #allocation8 [shape = 'u8[32768]{0}', space=vmem, size = 0x8000, scoped, tag = 'input window, operand 2']
    #allocation9 [shape = 'u8[8192]{0}', space=vmem, size = 0x2000, scoped, tag = 'input window, operand 3']
    #allocation10 [shape = 's32[2]{0}', space=sflag, size = 0x8, scoped, tag = 'scoped memory for tpu_custom_call.1']
    #allocation11 [shape = 'u8[8192]{0}', space=vmem, size = 0x2000, scoped, tag = 'input window, operand 4']
    #allocation12 [shape = 'u8[40960]{0}', space=vmem, size = 0xa000, scoped, tag = 'input window, operand 5']
    #allocation13 [shape = 's32[2]{0}', space=sflag, size = 0x8, scoped, tag = 'scoped memory for tpu_custom_call.1']
    #allocation14 [shape = 'u8[8192]{0}', space=vmem, size = 0x2000, scoped, tag = 'input window, operand 6']
    #allocation15 [shape = 'u8[73728]{0}', space=vmem, size = 0x12000, scoped, tag = 'input window, operand 7']
    #allocation16 [shape = 's32[2]{0}', space=sflag, size = 0x8, scoped, tag = 'scoped memory for tpu_custom_call.1']
    #allocation17 [shape = 'u8[24576]{0}', space=vmem, size = 0x6000, scoped, tag = 'input window, operand 8']
    #allocation18 [shape = 'u8[8192]{0}', space=vmem, size = 0x2000, scoped, tag = 'output window, operand 0']
    %14 = vsyncpa [#allocation4], 0
    %s15 = scalar_lea.sflag [#allocation4], 1
    %16 = vsyncpa %s15, 0
    %17 = vsyncpa [#allocation7], 0
    %s18 = scalar_lea.sflag [#allocation7], 1
    %19 = vsyncpa %s18, 0
    %20 = vsyncpa [#allocation10], 0
    %s21 = scalar_lea.sflag [#allocation10], 1
    %22 = vsyncpa %s21, 0
    %23 = vsyncpa [#allocation13], 0
    %s24 = scalar_lea.sflag [#allocation13], 1
    %25 = vsyncpa %s24, 0
    %26 = vsyncpa [#allocation16], 0
    %s27 = scalar_lea.sflag [#allocation16], 1
    %28 = vsyncpa %s27, 0
    %29 = vsyncpa [#allocation5], 0
    %s30 = scalar_lea.sflag [#allocation5], 1
    %31 = vsyncpa %s30, 0
    loop: start=0, step=1, limit=4
    $region2: #{tpu_custom_call.1} parent=1 // loop_pre_header
      _
    $region3: #{tpu_custom_call.1} parent=1 // loop_header
      %s33 = sphi 0, %s37
      %p34 = scmp.ge.s32.totalorder %s33, 4
      %s40 = sphi 0, %s52
      %s41 = sphi 0, %s48
      %s42 = sphi 0, %s40
      %s43 = sphi 0, %s41
      %s44 = sphi 0, %s42
      %s45 = sphi 0, %s43
      %s57 = sphi 0, %s59
      %s60 = sphi 0, %s57
      %s61 = sphi 0, %s60
      %s77 = sphi 0, %s61
      %s85 = sphi 0, %s87
      %s88 = sphi 0, %s85
      %s89 = sphi 0, %s88
      %s105 = sphi 0, %s89
      %s113 = sphi 0, %s115
      %s116 = sphi 0, %s113
      %s117 = sphi 0, %s116
      %s133 = sphi 0, %s117
      %s141 = sphi 0, %s143
      %s144 = sphi 0, %s141
      %s145 = sphi 0, %s144
      %s161 = sphi 0, %s145
      %s169 = sphi 0, %s171
      %s172 = sphi 0, %s169
      %s173 = sphi 0, %s172
      %s189 = sphi 0, %s173
      %s197 = sphi 0, %s199
      %s200 = sphi 0, %s197
      %s201 = sphi 0, %s200
      %s217 = sphi 0, %s201
      %s225 = sphi 0, %s227
      %s228 = sphi 0, %s225
      %s229 = sphi 0, %s228
      %s245 = sphi 0, %s229
      %s253 = sphi 0, %s255
      %s256 = sphi 0, %s253
      %s257 = sphi 0, %s256
      %s273 = sphi 0, %s257
      %s281 = sphi 0, %s283
      %s284 = sphi 0, %s281
      %s285 = sphi 0, %s284
      %s301 = sphi 0, %s285
      %s307 = sphi 0, %s309
      %s310 = sphi 0, %s307
      %s311 = sphi 0, %s310
      %s327 = sphi 0, %s311
    $region4: #{tpu_custom_call.1} parent=1 // loop_header_branch
      %36 = sbr.rel (%p34) target = $region8
    $region5: #{tpu_custom_call.1} parent=1 // loop_body
      %s38 = ssub.s32 %s33, 1
      %s39 = ssub.s32 %s33, 2
      %s46 = sadd.s32 1, %s41
      %p47 = scmp.ge.s32.totalorder %s46, 1
      %s48 = scalar_select %p47, 0, %s46
      %s49 = sadd.s32 1, %s40
      %s50 = scalar_select %p47, %s49, %s40
      %p51 = scmp.ge.s32.totalorder %s50, 2
      %s52 = scalar_select %p51, 0, %s50
      %s53 = ssub.s32 %s40, %s52
      %s54 = ssub.s32 %s41, %s48
      %s55 = sor.u32 %s53, %s54
      %p56 = scmp.eq.s32.totalorder %s55, 0
      %s58 = sadd.s32 %s57, 1
      %s59 = scalar_select %p56, %s57, %s58
      %p62 = pneg %p56
      %p63 = scmp.eq.s32.totalorder %s33, 1
      %p64 = por %p62, %p63
      %p65 = scmp.ne.s32.totalorder %s57, %s60
      %p66 = scmp.eq.s32.totalorder %s33, 0
      %p67 = por %p65, %p66
      %p68 = scmp.ne.s32.totalorder %s57, %s60
      %p69 = scmp.eq.s32.totalorder %s38, 1
      %p70 = por %p68, %p69
      %p71 = scmp.ne.s32.totalorder %s60, %s61
      %p72 = scmp.eq.s32.totalorder %s38, 0
      %p73 = por %p71, %p72
      %p74 = scmp.ne.s32.totalorder %s60, %s61
      %p75 = scmp.eq.s32.totalorder %s39, 1
      %p76 = por %p74, %p75
      %p78 = scmp.ne.s32.totalorder %s61, %s77
      %p79 = scmp.eq.s32.totalorder %s39, 0
      %p80 = por %p78, %p79
      %s81 = ssub.s32 %s40, %s52
      %s82 = ssub.s32 %s41, %s48
      %s83 = sor.u32 %s81, %s82
      %p84 = scmp.eq.s32.totalorder %s83, 0
      %s86 = sadd.s32 %s85, 1
      %s87 = scalar_select %p84, %s85, %s86
      %p90 = pneg %p84
      %p91 = scmp.eq.s32.totalorder %s33, 1
      %p92 = por %p90, %p91
      %p93 = scmp.ne.s32.totalorder %s85, %s88
      %p94 = scmp.eq.s32.totalorder %s33, 0
      %p95 = por %p93, %p94
      %p96 = scmp.ne.s32.totalorder %s85, %s88
      %p97 = scmp.eq.s32.totalorder %s38, 1
      %p98 = por %p96, %p97
      %p99 = scmp.ne.s32.totalorder %s88, %s89
      %p100 = scmp.eq.s32.totalorder %s38, 0
      %p101 = por %p99, %p100
      %p102 = scmp.ne.s32.totalorder %s88, %s89
      %p103 = scmp.eq.s32.totalorder %s39, 1
      %p104 = por %p102, %p103
      %p106 = scmp.ne.s32.totalorder %s89, %s105
      %p107 = scmp.eq.s32.totalorder %s39, 0
      %p108 = por %p106, %p107
      %s109 = ssub.s32 %s40, %s52
      %s110 = ssub.s32 %s41, %s48
      %s111 = sor.u32 %s109, %s110
      %p112 = scmp.eq.s32.totalorder %s111, 0
      %s114 = sadd.s32 %s113, 1
      %s115 = scalar_select %p112, %s113, %s114
      %p118 = pneg %p112
      %p119 = scmp.eq.s32.totalorder %s33, 1
      %p120 = por %p118, %p119
      %p121 = scmp.ne.s32.totalorder %s113, %s116
      %p122 = scmp.eq.s32.totalorder %s33, 0
      %p123 = por %p121, %p122
      %p124 = scmp.ne.s32.totalorder %s113, %s116
      %p125 = scmp.eq.s32.totalorder %s38, 1
      %p126 = por %p124, %p125
      %p127 = scmp.ne.s32.totalorder %s116, %s117
      %p128 = scmp.eq.s32.totalorder %s38, 0
      %p129 = por %p127, %p128
      %p130 = scmp.ne.s32.totalorder %s116, %s117
      %p131 = scmp.eq.s32.totalorder %s39, 1
      %p132 = por %p130, %p131
      %p134 = scmp.ne.s32.totalorder %s117, %s133
      %p135 = scmp.eq.s32.totalorder %s39, 0
      %p136 = por %p134, %p135
      %s137 = ssub.s32 %s40, %s52
      %s138 = ssub.s32 %s41, %s48
      %s139 = sor.u32 %s137, %s138
      %p140 = scmp.eq.s32.totalorder %s139, 0
      %s142 = sadd.s32 %s141, 1
      %s143 = scalar_select %p140, %s141, %s142
      %p146 = pneg %p140
      %p147 = scmp.eq.s32.totalorder %s33, 1
      %p148 = por %p146, %p147
      %p149 = scmp.ne.s32.totalorder %s141, %s144
      %p150 = scmp.eq.s32.totalorder %s33, 0
      %p151 = por %p149, %p150
      %p152 = scmp.ne.s32.totalorder %s141, %s144
      %p153 = scmp.eq.s32.totalorder %s38, 1
      %p154 = por %p152, %p153
      %p155 = scmp.ne.s32.totalorder %s144, %s145
      %p156 = scmp.eq.s32.totalorder %s38, 0
      %p157 = por %p155, %p156
      %p158 = scmp.ne.s32.totalorder %s144, %s145
      %p159 = scmp.eq.s32.totalorder %s39, 1
      %p160 = por %p158, %p159
      %p162 = scmp.ne.s32.totalorder %s145, %s161
      %p163 = scmp.eq.s32.totalorder %s39, 0
      %p164 = por %p162, %p163
      %s165 = ssub.s32 %s40, %s52
      %s166 = ssub.s32 %s41, %s48
      %s167 = sor.u32 %s165, %s166
      %p168 = scmp.eq.s32.totalorder %s167, 0
      %s170 = sadd.s32 %s169, 1
      %s171 = scalar_select %p168, %s169, %s170
      %p174 = pneg %p168
      %p175 = scmp.eq.s32.totalorder %s33, 1
      %p176 = por %p174, %p175
      %p177 = scmp.ne.s32.totalorder %s169, %s172
      %p178 = scmp.eq.s32.totalorder %s33, 0
      %p179 = por %p177, %p178
      %p180 = scmp.ne.s32.totalorder %s169, %s172
      %p181 = scmp.eq.s32.totalorder %s38, 1
      %p182 = por %p180, %p181
      %p183 = scmp.ne.s32.totalorder %s172, %s173
      %p184 = scmp.eq.s32.totalorder %s38, 0
      %p185 = por %p183, %p184
      %p186 = scmp.ne.s32.totalorder %s172, %s173
      %p187 = scmp.eq.s32.totalorder %s39, 1
      %p188 = por %p186, %p187
      %p190 = scmp.ne.s32.totalorder %s173, %s189
      %p191 = scmp.eq.s32.totalorder %s39, 0
      %p192 = por %p190, %p191
      %s193 = ssub.s32 %s40, %s52
      %s194 = ssub.s32 %s41, %s48
      %s195 = sor.u32 %s193, %s194
      %p196 = scmp.eq.s32.totalorder %s195, 0
      %s198 = sadd.s32 %s197, 1
      %s199 = scalar_select %p196, %s197, %s198
      %p202 = pneg %p196
      %p203 = scmp.eq.s32.totalorder %s33, 1
      %p204 = por %p202, %p203
      %p205 = scmp.ne.s32.totalorder %s197, %s200
      %p206 = scmp.eq.s32.totalorder %s33, 0
      %p207 = por %p205, %p206
      %p208 = scmp.ne.s32.totalorder %s197, %s200
      %p209 = scmp.eq.s32.totalorder %s38, 1
      %p210 = por %p208, %p209
      %p211 = scmp.ne.s32.totalorder %s200, %s201
      %p212 = scmp.eq.s32.totalorder %s38, 0
      %p213 = por %p211, %p212
      %p214 = scmp.ne.s32.totalorder %s200, %s201
      %p215 = scmp.eq.s32.totalorder %s39, 1
      %p216 = por %p214, %p215
      %p218 = scmp.ne.s32.totalorder %s201, %s217
      %p219 = scmp.eq.s32.totalorder %s39, 0
      %p220 = por %p218, %p219
      %s221 = ssub.s32 %s40, %s52
      %s222 = ssub.s32 %s41, %s48
      %s223 = sor.u32 %s221, %s222
      %p224 = scmp.eq.s32.totalorder %s223, 0
      %s226 = sadd.s32 %s225, 1
      %s227 = scalar_select %p224, %s225, %s226
      %p230 = pneg %p224
      %p231 = scmp.eq.s32.totalorder %s33, 1
      %p232 = por %p230, %p231
      %p233 = scmp.ne.s32.totalorder %s225, %s228
      %p234 = scmp.eq.s32.totalorder %s33, 0
      %p235 = por %p233, %p234
      %p236 = scmp.ne.s32.totalorder %s225, %s228
      %p237 = scmp.eq.s32.totalorder %s38, 1
      %p238 = por %p236, %p237
      %p239 = scmp.ne.s32.totalorder %s228, %s229
      %p240 = scmp.eq.s32.totalorder %s38, 0
      %p241 = por %p239, %p240
      %p242 = scmp.ne.s32.totalorder %s228, %s229
      %p243 = scmp.eq.s32.totalorder %s39, 1
      %p244 = por %p242, %p243
      %p246 = scmp.ne.s32.totalorder %s229, %s245
      %p247 = scmp.eq.s32.totalorder %s39, 0
      %p248 = por %p246, %p247
      %s249 = ssub.s32 %s40, %s52
      %s250 = ssub.s32 %s41, %s48
      %s251 = sor.u32 %s249, %s250
      %p252 = scmp.eq.s32.totalorder %s251, 0
      %s254 = sadd.s32 %s253, 1
      %s255 = scalar_select %p252, %s253, %s254
      %p258 = pneg %p252
      %p259 = scmp.eq.s32.totalorder %s33, 1
      %p260 = por %p258, %p259
      %p261 = scmp.ne.s32.totalorder %s253, %s256
      %p262 = scmp.eq.s32.totalorder %s33, 0
      %p263 = por %p261, %p262
      %p264 = scmp.ne.s32.totalorder %s253, %s256
      %p265 = scmp.eq.s32.totalorder %s38, 1
      %p266 = por %p264, %p265
      %p267 = scmp.ne.s32.totalorder %s256, %s257
      %p268 = scmp.eq.s32.totalorder %s38, 0
      %p269 = por %p267, %p268
      %p270 = scmp.ne.s32.totalorder %s256, %s257
      %p271 = scmp.eq.s32.totalorder %s39, 1
      %p272 = por %p270, %p271
      %p274 = scmp.ne.s32.totalorder %s257, %s273
      %p275 = scmp.eq.s32.totalorder %s39, 0
      %p276 = por %p274, %p275
      %s277 = ssub.s32 %s40, %s52
      %s278 = ssub.s32 %s41, %s48
      %s279 = sor.u32 %s277, %s278
      %p280 = scmp.eq.s32.totalorder %s279, 0
      %s282 = sadd.s32 %s281, 1
      %s283 = scalar_select %p280, %s281, %s282
      %p286 = pneg %p280
      %p287 = scmp.eq.s32.totalorder %s33, 1
      %p288 = por %p286, %p287
      %p289 = scmp.ne.s32.totalorder %s281, %s284
      %p290 = scmp.eq.s32.totalorder %s33, 0
      %p291 = por %p289, %p290
      %p292 = scmp.ne.s32.totalorder %s281, %s284
      %p293 = scmp.eq.s32.totalorder %s38, 1
      %p294 = por %p292, %p293
      %p295 = scmp.ne.s32.totalorder %s284, %s285
      %p296 = scmp.eq.s32.totalorder %s38, 0
      %p297 = por %p295, %p296
      %p298 = scmp.ne.s32.totalorder %s284, %s285
      %p299 = scmp.eq.s32.totalorder %s39, 1
      %p300 = por %p298, %p299
      %p302 = scmp.ne.s32.totalorder %s285, %s301
      %p303 = scmp.eq.s32.totalorder %s39, 0
      %p304 = por %p302, %p303
      %s305 = ssub.s32 %s40, %s52
      %p306 = scmp.eq.s32.totalorder %s305, 0
      %s308 = sadd.s32 %s307, 1
      %s309 = scalar_select %p306, %s307, %s308
      %p312 = pneg %p306
      %p313 = scmp.eq.s32.totalorder %s33, 1
      %p314 = por %p312, %p313
      %p315 = scmp.ne.s32.totalorder %s307, %s310
      %p316 = scmp.eq.s32.totalorder %s33, 0
      %p317 = por %p315, %p316
      %p318 = scmp.ne.s32.totalorder %s307, %s310
      %p319 = scmp.eq.s32.totalorder %s38, 1
      %p320 = por %p318, %p319
      %p321 = scmp.ne.s32.totalorder %s310, %s311
      %p322 = scmp.eq.s32.totalorder %s38, 0
      %p323 = por %p321, %p322
      %p324 = scmp.ne.s32.totalorder %s310, %s311
      %p325 = scmp.eq.s32.totalorder %s39, 1
      %p326 = por %p324, %p325
      %p328 = scmp.ne.s32.totalorder %s311, %s327
      %p329 = scmp.eq.s32.totalorder %s39, 0
      %p330 = por %p328, %p329
      %p331 = scmp.le.s32.totalorder 1, %s33
      %p332 = scmp.lt.s32.totalorder %s33, 3
      %p333 = pnand %p331, %p332
      %p334 = pneg %p333
      // Predicated region
      $region9: #{tpu_custom_call.1} parent=5 // pred_check
        _
      $region10: #{tpu_custom_call.1} parent=5 // pred_check_branch
        %336 = sbr.rel (%p333) target = $region12
      $region11: #{tpu_custom_call.1} parent=5 // pred_region
        %s337 = ssub.s32 %s33, 1
      $region12: #{tpu_custom_call.1} parent=5 // pred_fallthru
        _
      %p338 = scmp.lt.s32.totalorder %s33, 2
      // Predicated region
      $region13: #{tpu_custom_call.1} parent=5 // pred_check
        %p339 = pneg %p338
      $region14: #{tpu_custom_call.1} parent=5 // pred_check_branch
        %341 = sbr.rel (%p339) target = $region16
      $region15: #{tpu_custom_call.1} parent=5 // pred_region
        // Predicated region
        $region17: #{tpu_custom_call.1} parent=15 // pred_check
          %p342 = pneg %p67
        $region18: #{tpu_custom_call.1} parent=15 // pred_check_branch
          %344 = sbr.rel (%p342) target = $region20
        $region19: #{tpu_custom_call.1} parent=15 // pred_region
          %s345 = sand.u32 %s57, 1
          %s346 = scalar_lea.sflag [#allocation4], %s345
          %s347 = sand.u32 %s57, 1
          %s348 = smul.addr %s347, 4
          %s349 = scalar_lea.vmem [#allocation3], %s348
          %s351 = ssub.s32 64, 64
          %352 = vsyncadd %s346, %s351
          %s353 = sadd.s32 %s41, %s40
          %s354 = smul.addr %s353, 64
          %s355 = scalar_lea.hbm %s0, %s354
          %s357 = sshll.u32 %s349, 4
          %s358 = int_to_ptr.vmem [resolvable:$true] %s357
          %360 = dma.hbm_to_vmem [thread:$0]  %s355, 64, %s358, %s346
        $region20: #{tpu_custom_call.1} parent=15 // pred_fallthru
          _
        // Predicated region
        $region21: #{tpu_custom_call.1} parent=15 // pred_check
          %p361 = pneg %p95
        $region22: #{tpu_custom_call.1} parent=15 // pred_check_branch
          %363 = sbr.rel (%p361) target = $region24
        $region23: #{tpu_custom_call.1} parent=15 // pred_region
          %s364 = sand.u32 %s33, 1
          %s365 = scalar_lea.sflag [#allocation7], %s364
          %s366 = sand.u32 %s85, 1
          %s367 = smul.addr %s366, 16
          %s368 = scalar_lea.vmem [#allocation6], %s367
          %s370 = ssub.s32 256, 256
          %371 = vsyncadd %s365, %s370
          %s372 = smul.addr %s40, 4
          %s373 = sadd.s32 %s41, %s372
          %s374 = smul.addr %s373, 64
          %s375 = scalar_lea.hbm %s1, %s374
          %s376 = sshll.u32 %s368, 4
          %s377 = int_to_ptr.vmem [resolvable:$true] %s376
          %382 = dma.hbm_to_vmem [thread:$0]  %s375, 256, %s377, %s365, 64, 64, 4
        $region24: #{tpu_custom_call.1} parent=15 // pred_fallthru
          _
        // Predicated region
        $region25: #{tpu_custom_call.1} parent=15 // pred_check
          %p383 = pneg %p123
        $region26: #{tpu_custom_call.1} parent=15 // pred_check_branch
          %385 = sbr.rel (%p383) target = $region28
        $region27: #{tpu_custom_call.1} parent=15 // pred_region
          %s386 = sand.u32 %s33, 1
          %s387 = scalar_lea.sflag [#allocation7], %s386
          %s388 = sand.u32 %s113, 1
          %s389 = smul.addr %s388, 32
          %s390 = scalar_lea.vmem [#allocation8], %s389
          %s392 = ssub.s32 512, 512
          %393 = vsyncadd %s387, %s392
          %s394 = smul.addr %s40, 8
          %s395 = sadd.s32 %s41, %s394
          %s396 = smul.addr %s395, 64
          %s397 = scalar_lea.hbm %s2, %s396
          %s398 = sshll.u32 %s390, 4
          %s399 = int_to_ptr.vmem [resolvable:$true] %s398
          %404 = dma.hbm_to_vmem [thread:$0]  %s397, 512, %s399, %s387, 64, 64, 4
        $region28: #{tpu_custom_call.1} parent=15 // pred_fallthru
          _
        // Predicated region
        $region29: #{tpu_custom_call.1} parent=15 // pred_check
          %p405 = pneg %p151
        $region30: #{tpu_custom_call.1} parent=15 // pred_check_branch
          %407 = sbr.rel (%p405) target = $region32
        $region31: #{tpu_custom_call.1} parent=15 // pred_region
          %s408 = sand.u32 %s33, 1
          %s409 = scalar_lea.sflag [#allocation10], %s408
          %s410 = sand.u32 %s141, 1
          %s411 = smul.addr %s410, 8
          %s412 = scalar_lea.vmem [#allocation9], %s411
          %s414 = ssub.s32 128, 128
          %415 = vsyncadd %s409, %s414
          %s416 = smul.addr %s40, 2
          %s417 = sadd.s32 %s41, %s416
          %s418 = smul.addr %s417, 64
          %s419 = scalar_lea.hbm %s3, %s418
          %s420 = sshll.u32 %s412, 4
          %s421 = int_to_ptr.vmem [resolvable:$true] %s420
          %426 = dma.hbm_to_vmem [thread:$0]  %s419, 128, %s421, %s409, 64, 64, 4
        $region32: #{tpu_custom_call.1} parent=15 // pred_fallthru
          _
        // Predicated region
        $region33: #{tpu_custom_call.1} parent=15 // pred_check
          %p427 = pneg %p179
        $region34: #{tpu_custom_call.1} parent=15 // pred_check_branch
          %429 = sbr.rel (%p427) target = $region36
        $region35: #{tpu_custom_call.1} parent=15 // pred_region
          %s430 = sand.u32 %s33, 1
          %s431 = scalar_lea.sflag [#allocation10], %s430
          %s432 = sand.u32 %s169, 1
          %s433 = smul.addr %s432, 8
          %s434 = scalar_lea.vmem [#allocation11], %s433
          %s436 = ssub.s32 128, 128
          %437 = vsyncadd %s431, %s436
          %s438 = sadd.s32 %s41, %s40
          %s439 = smul.addr %s438, 128
          %s440 = scalar_lea.hbm %s4, %s439
          %s442 = sshll.u32 %s434, 4
          %s443 = int_to_ptr.vmem [resolvable:$true] %s442
          %445 = dma.hbm_to_vmem [thread:$0]  %s440, 128, %s443, %s431
        $region36: #{tpu_custom_call.1} parent=15 // pred_fallthru
          _
        // Predicated region
        $region37: #{tpu_custom_call.1} parent=15 // pred_check
          %p446 = pneg %p207
        $region38: #{tpu_custom_call.1} parent=15 // pred_check_branch
          %448 = sbr.rel (%p446) target = $region40
        $region39: #{tpu_custom_call.1} parent=15 // pred_region
          %s449 = sand.u32 %s33, 1
          %s450 = scalar_lea.sflag [#allocation13], %s449
          %s451 = sand.u32 %s197, 1
          %s452 = smul.addr %s451, 40
          %s453 = scalar_lea.vmem [#allocation12], %s452
          %s455 = ssub.s32 640, 640
          %456 = vsyncadd %s450, %s455
          %s457 = smul.addr %s40, 5
          %s458 = sadd.s32 %s41, %s457
          %s459 = smul.addr %s458, 128
          %s460 = scalar_lea.hbm %s5, %s459
          %s461 = sshll.u32 %s453, 4
          %s462 = int_to_ptr.vmem [resolvable:$true] %s461
          %467 = dma.hbm_to_vmem [thread:$0]  %s460, 640, %s462, %s450, 128, 128, 8
        $region40: #{tpu_custom_call.1} parent=15 // pred_fallthru
          _
        // Predicated region
        $region41: #{tpu_custom_call.1} parent=15 // pred_check
          %p468 = pneg %p235
        $region42: #{tpu_custom_call.1} parent=15 // pred_check_branch
          %470 = sbr.rel (%p468) target = $region44
        $region43: #{tpu_custom_call.1} parent=15 // pred_region
          %s471 = sand.u32 %s33, 1
          %s472 = scalar_lea.sflag [#allocation13], %s471
          %s473 = sand.u32 %s225, 1
          %s474 = smul.addr %s473, 8
          %s475 = scalar_lea.vmem [#allocation14], %s474
          %s477 = ssub.s32 128, 128
          %478 = vsyncadd %s472, %s477
          %s479 = sadd.s32 %s41, %s40
          %s480 = smul.addr %s479, 128
          %s481 = scalar_lea.hbm %s6, %s480
          %s483 = sshll.u32 %s475, 4
          %s484 = int_to_ptr.vmem [resolvable:$true] %s483
          %486 = dma.hbm_to_vmem [thread:$0]  %s481, 128, %s484, %s472
        $region44: #{tpu_custom_call.1} parent=15 // pred_fallthru
          _
        // Predicated region
        $region45: #{tpu_custom_call.1} parent=15 // pred_check
          %p487 = pneg %p263
        $region46: #{tpu_custom_call.1} parent=15 // pred_check_branch
          %489 = sbr.rel (%p487) target = $region48
        $region47: #{tpu_custom_call.1} parent=15 // pred_region
          %s490 = sand.u32 %s33, 1
          %s491 = scalar_lea.sflag [#allocation16], %s490
          %s492 = sand.u32 %s253, 1
          %s493 = smul.addr %s492, 72
          %s494 = scalar_lea.vmem [#allocation15], %s493
          %s496 = ssub.s32 1152, 1152
          %497 = vsyncadd %s491, %s496
          %s498 = smul.addr %s40, 9
          %s499 = sadd.s32 %s41, %s498
          %s500 = smul.addr %s499, 128
          %s501 = scalar_lea.hbm %s7, %s500
          %s502 = sshll.u32 %s494, 4
          %s503 = int_to_ptr.vmem [resolvable:$true] %s502
          %508 = dma.hbm_to_vmem [thread:$0]  %s501, 1152, %s503, %s491, 128, 128, 8
        $region48: #{tpu_custom_call.1} parent=15 // pred_fallthru
          _
        // Predicated region
        $region49: #{tpu_custom_call.1} parent=15 // pred_check
          %p509 = pneg %p291
        $region50: #{tpu_custom_call.1} parent=15 // pred_check_branch
          %511 = sbr.rel (%p509) target = $region52
        $region51: #{tpu_custom_call.1} parent=15 // pred_region
          %s512 = sand.u32 %s33, 1
          %s513 = scalar_lea.sflag [#allocation16], %s512
          %s514 = sand.u32 %s281, 1
          %s515 = smul.addr %s514, 24
          %s516 = scalar_lea.vmem [#allocation17], %s515
          %s518 = ssub.s32 384, 384
          %519 = vsyncadd %s513, %s518
          %s520 = smul.addr %s40, 3
          %s521 = sadd.s32 %s41, %s520
          %s522 = smul.addr %s521, 128
          %s523 = scalar_lea.hbm %s8, %s522
          %s524 = sshll.u32 %s516, 4
          %s525 = int_to_ptr.vmem [resolvable:$true] %s524
          %530 = dma.hbm_to_vmem [thread:$0]  %s523, 384, %s525, %s513, 128, 128, 8
        $region52: #{tpu_custom_call.1} parent=15 // pred_fallthru
          _
      $region16: #{tpu_custom_call.1} parent=5 // pred_fallthru
        _
      %p531 = scmp.le.s32.totalorder 1, %s33
      %p532 = scmp.lt.s32.totalorder %s33, 3
      %p533 = pnand %p531, %p532
      %p534 = pneg %p533
      // Predicated region
      $region53: #{tpu_custom_call.1} parent=5 // pred_check
        _
      $region54: #{tpu_custom_call.1} parent=5 // pred_check_branch
        %536 = sbr.rel (%p533) target = $region56
      $region55: #{tpu_custom_call.1} parent=5 // pred_region
        %s537 = ssub.s32 %s33, 1
        %s538 = sand.u32 %s60, 1
        %s539 = scalar_lea.sflag [#allocation4], %s538
        %s540 = sand.u32 %s60, 1
        %s541 = smul.addr %s540, 4
        %s542 = scalar_lea.vmem [#allocation3], %s541
        // Predicated region
        $region57: #{tpu_custom_call.1} parent=55 // pred_check
          %p543 = pneg %p73
        $region58: #{tpu_custom_call.1} parent=55 // pred_check_branch
          %545 = sbr.rel (%p543) target = $region60
        $region59: #{tpu_custom_call.1} parent=55 // pred_region
          %546 = dma.done %s539, 64
        $region60: #{tpu_custom_call.1} parent=55 // pred_fallthru
          _
        %s547 = sand.u32 %s38, 1
        %s548 = scalar_lea.sflag [#allocation7], %s547
        %s549 = sand.u32 %s88, 1
        %s550 = smul.addr %s549, 16
        %s551 = scalar_lea.vmem [#allocation6], %s550
        // Predicated region
        $region61: #{tpu_custom_call.1} parent=55 // pred_check
          %p552 = pneg %p101
        $region62: #{tpu_custom_call.1} parent=55 // pred_check_branch
          %554 = sbr.rel (%p552) target = $region64
        $region63: #{tpu_custom_call.1} parent=55 // pred_region
          %555 = dma.done %s548, 256
        $region64: #{tpu_custom_call.1} parent=55 // pred_fallthru
          _
        %s556 = sand.u32 %s38, 1
        %s557 = scalar_lea.sflag [#allocation7], %s556
        %s558 = sand.u32 %s116, 1
        %s559 = smul.addr %s558, 32
        %s560 = scalar_lea.vmem [#allocation8], %s559
        // Predicated region
        $region65: #{tpu_custom_call.1} parent=55 // pred_check
          %p561 = pneg %p129
        $region66: #{tpu_custom_call.1} parent=55 // pred_check_branch
          %563 = sbr.rel (%p561) target = $region68
        $region67: #{tpu_custom_call.1} parent=55 // pred_region
          %564 = dma.done %s557, 512
        $region68: #{tpu_custom_call.1} parent=55 // pred_fallthru
          _
        %s565 = sand.u32 %s38, 1
        %s566 = scalar_lea.sflag [#allocation10], %s565
        %s567 = sand.u32 %s144, 1
        %s568 = smul.addr %s567, 8
        %s569 = scalar_lea.vmem [#allocation9], %s568
        // Predicated region
        $region69: #{tpu_custom_call.1} parent=55 // pred_check
          %p570 = pneg %p157
        $region70: #{tpu_custom_call.1} parent=55 // pred_check_branch
          %572 = sbr.rel (%p570) target = $region72
        $region71: #{tpu_custom_call.1} parent=55 // pred_region
          %573 = dma.done %s566, 128
        $region72: #{tpu_custom_call.1} parent=55 // pred_fallthru
          _
        %s574 = sand.u32 %s38, 1
        %s575 = scalar_lea.sflag [#allocation10], %s574
        %s576 = sand.u32 %s172, 1
        %s577 = smul.addr %s576, 8
        %s578 = scalar_lea.vmem [#allocation11], %s577
        // Predicated region
        $region73: #{tpu_custom_call.1} parent=55 // pred_check
          %p579 = pneg %p185
        $region74: #{tpu_custom_call.1} parent=55 // pred_check_branch
          %581 = sbr.rel (%p579) target = $region76
        $region75: #{tpu_custom_call.1} parent=55 // pred_region
          %582 = dma.done %s575, 128
        $region76: #{tpu_custom_call.1} parent=55 // pred_fallthru
          _
        %s583 = sand.u32 %s38, 1
        %s584 = scalar_lea.sflag [#allocation13], %s583
        %s585 = sand.u32 %s200, 1
        %s586 = smul.addr %s585, 40
        %s587 = scalar_lea.vmem [#allocation12], %s586
        // Predicated region
        $region77: #{tpu_custom_call.1} parent=55 // pred_check
          %p588 = pneg %p213
        $region78: #{tpu_custom_call.1} parent=55 // pred_check_branch
          %590 = sbr.rel (%p588) target = $region80
        $region79: #{tpu_custom_call.1} parent=55 // pred_region
          %591 = dma.done %s584, 640
        $region80: #{tpu_custom_call.1} parent=55 // pred_fallthru
          _
        %s592 = sand.u32 %s38, 1
        %s593 = scalar_lea.sflag [#allocation13], %s592
        %s594 = sand.u32 %s228, 1
        %s595 = smul.addr %s594, 8
        %s596 = scalar_lea.vmem [#allocation14], %s595
        // Predicated region
        $region81: #{tpu_custom_call.1} parent=55 // pred_check
          %p597 = pneg %p241
        $region82: #{tpu_custom_call.1} parent=55 // pred_check_branch
          %599 = sbr.rel (%p597) target = $region84
        $region83: #{tpu_custom_call.1} parent=55 // pred_region
          %600 = dma.done %s593, 128
        $region84: #{tpu_custom_call.1} parent=55 // pred_fallthru
          _
        %s601 = sand.u32 %s38, 1
        %s602 = scalar_lea.sflag [#allocation16], %s601
        %s603 = sand.u32 %s256, 1
        %s604 = smul.addr %s603, 72
        %s605 = scalar_lea.vmem [#allocation15], %s604
        // Predicated region
        $region85: #{tpu_custom_call.1} parent=55 // pred_check
          %p606 = pneg %p269
        $region86: #{tpu_custom_call.1} parent=55 // pred_check_branch
          %608 = sbr.rel (%p606) target = $region88
        $region87: #{tpu_custom_call.1} parent=55 // pred_region
          %609 = dma.done %s602, 1152
        $region88: #{tpu_custom_call.1} parent=55 // pred_fallthru
          _
        %s610 = sand.u32 %s38, 1
        %s611 = scalar_lea.sflag [#allocation16], %s610
        %s612 = sand.u32 %s284, 1
        %s613 = smul.addr %s612, 24
        %s614 = scalar_lea.vmem [#allocation17], %s613
        // Predicated region
        $region89: #{tpu_custom_call.1} parent=55 // pred_check
          %p615 = pneg %p297
        $region90: #{tpu_custom_call.1} parent=55 // pred_check_branch
          %617 = sbr.rel (%p615) target = $region92
        $region91: #{tpu_custom_call.1} parent=55 // pred_region
          %618 = dma.done %s611, 384
        $region92: #{tpu_custom_call.1} parent=55 // pred_fallthru
          _
        %s619 = sand.u32 %s60, 1
        %s620 = scalar_lea.sflag [#allocation4], %s619
        %s621 = sand.u32 %s60, 1
        %s622 = smul.addr %s621, 4
        %s623 = scalar_lea.vmem [#allocation3], %s622
        %p624 = pneg %p73
        %p625 = pneg %p70
        %s626 = sand.u32 %s38, 1
        %s627 = scalar_lea.sflag [#allocation7], %s626
        %s628 = sand.u32 %s88, 1
        %s629 = smul.addr %s628, 16
        %s630 = scalar_lea.vmem [#allocation6], %s629
        %p631 = pneg %p101
        %p632 = pneg %p98
        %s633 = sand.u32 %s38, 1
        %s634 = scalar_lea.sflag [#allocation7], %s633
        %s635 = sand.u32 %s116, 1
        %s636 = smul.addr %s635, 32
        %s637 = scalar_lea.vmem [#allocation8], %s636
        %p638 = pneg %p129
        %p639 = pneg %p126
        %s640 = sand.u32 %s38, 1
        %s641 = scalar_lea.sflag [#allocation10], %s640
        %s642 = sand.u32 %s144, 1
        %s643 = smul.addr %s642, 8
        %s644 = scalar_lea.vmem [#allocation9], %s643
        %p645 = pneg %p157
        %p646 = pneg %p154
        %s647 = sand.u32 %s38, 1
        %s648 = scalar_lea.sflag [#allocation10], %s647
        %s649 = sand.u32 %s172, 1
        %s650 = smul.addr %s649, 8
        %s651 = scalar_lea.vmem [#allocation11], %s650
        %p652 = pneg %p185
        %p653 = pneg %p182
        %s654 = sand.u32 %s38, 1
        %s655 = scalar_lea.sflag [#allocation13], %s654
        %s656 = sand.u32 %s200, 1
        %s657 = smul.addr %s656, 40
        %s658 = scalar_lea.vmem [#allocation12], %s657
        %p659 = pneg %p213
        %p660 = pneg %p210
        %s661 = sand.u32 %s38, 1
        %s662 = scalar_lea.sflag [#allocation13], %s661
        %s663 = sand.u32 %s228, 1
        %s664 = smul.addr %s663, 8
        %s665 = scalar_lea.vmem [#allocation14], %s664
        %p666 = pneg %p241
        %p667 = pneg %p238
        %s668 = sand.u32 %s38, 1
        %s669 = scalar_lea.sflag [#allocation16], %s668
        %s670 = sand.u32 %s256, 1
        %s671 = smul.addr %s670, 72
        %s672 = scalar_lea.vmem [#allocation15], %s671
        %p673 = pneg %p269
        %p674 = pneg %p266
        %s675 = sand.u32 %s38, 1
        %s676 = scalar_lea.sflag [#allocation16], %s675
        %s677 = sand.u32 %s284, 1
        %s678 = smul.addr %s677, 24
        %s679 = scalar_lea.vmem [#allocation17], %s678
        %p680 = pneg %p297
        %p681 = pneg %p294
        %p682 = pneg %p323
        %p683 = pneg %p320
        %s684 = sand.u32 %s310, 1
        %s685 = scalar_lea.sflag [#allocation5], %s684
        %s686 = sand.u32 %s310, 1
        %s687 = smul.addr %s686, 8
        %s688 = scalar_lea.vmem [#allocation18], %s687
        %p689 = scmp.eq.s32.totalorder %s43, 0
        // Predicated region
        $region93: #{tpu_custom_call.1} parent=55 // pred_check
          %p690 = pneg %p689
        $region94: #{tpu_custom_call.1} parent=55 // pred_check_branch
          %692 = sbr.rel (%p690) target = $region96
        $region95: #{tpu_custom_call.1} parent=55 // pred_region
          %693 = vst [vmem:[#allocation2] sm:$0xff] 0.0
          %694 = vst [vmem:[#allocation2 + $0x8] sm:$0xff] 0.0
          %695 = vst [vmem:[#allocation2 + $0x10] sm:$0xff] 0.0
          %696 = vst [vmem:[#allocation2 + $0x18] sm:$0xff] 0.0
          %697 = vst [vmem:[#allocation2 + $0x20] sm:$0xff] 0.0
          %698 = vst [vmem:[#allocation2 + $0x28] sm:$0xff] 0.0
          %699 = vst [vmem:[#allocation2 + $0x30] sm:$0xff] 0.0
          %700 = vst [vmem:[#allocation2 + $0x38] sm:$0xff] 0.0
        $region96: #{tpu_custom_call.1} parent=55 // pred_fallthru
          _
        %v701 = vld [vmem:[%s542] sm:$0xf]
        %v702 = vunpack.c.l.bf16 %v701
        %v703 = vld [vmem:[%s578] sm:$0xff]
        %v704 = vld [vmem:[%s596] sm:$0xff]
        %v705 = vmul.f32 %v703, %v704
        %v706 = vld [vmem:[%s587] sm:$0xff]
        %v707 = vld [vmem:[%s587 + $0x8] sm:$0xff]
        %v708 = vld [vmem:[%s587 + $0x10] sm:$0xff]
        %v709 = vld [vmem:[%s587 + $0x18] sm:$0xff]
        %v710 = vld [vmem:[%s587 + $0x20] sm:$0xff]
        %v711 = vld [vmem:[%s551] sm:$0xf]
        %v712 = vld [vmem:[%s551 + $0x4] sm:$0xf]
        %v713 = vld [vmem:[%s551 + $0x8] sm:$0xf]
        %v714 = vld [vmem:[%s551 + $0xc] sm:$0xf]
        %v715 = vunpack.c.l.bf16 %v711
        %v716 = vunpack.c.l.bf16 %v712
        %v717 = vunpack.c.l.bf16 %v713
        %v718 = vunpack.c.l.bf16 %v714
        %v719 = vsub.f32 %v706, %v715
        %v720 = vsub.f32 %v707, %v716
        %v721 = vsub.f32 %v708, %v717
        %v722 = vsub.f32 %v709, %v718
        %v723 = vand.u32 2147483647, %v719
        %v724 = vand.u32 2147483647, %v720
        %v725 = vand.u32 2147483647, %v721
        %v726 = vand.u32 2147483647, %v722
        %vm727 = vcmp.lt.f32.partialorder %v723, 1.0
        %vm728 = vcmp.lt.f32.partialorder %v724, 1.0
        %vm729 = vcmp.lt.f32.partialorder %v725, 1.0
        %vm730 = vcmp.lt.f32.partialorder %v726, 1.0
        %v731 = vmul.f32 %v723, 0.5
        %v732 = vmul.f32 %v724, 0.5
        %v733 = vmul.f32 %v725, 0.5
        %v734 = vmul.f32 %v726, 0.5
        %v735 = vmul.f32 %v731, %v723
        %v736 = vmul.f32 %v732, %v724
        %v737 = vmul.f32 %v733, %v725
        %v738 = vmul.f32 %v734, %v726
        %v739 = vsub.f32 %v723, 0.5
        %v740 = vsub.f32 %v724, 0.5
        %v741 = vsub.f32 %v725, 0.5
        %v742 = vsub.f32 %v726, 0.5
        %v743 = vsel %vm727, %v735, %v739
        %v744 = vsel %vm728, %v736, %v740
        %v745 = vsel %vm729, %v737, %v741
        %v746 = vsel %vm730, %v738, %v742
        %v747 = vadd.f32 %v743, %v744
        %v748 = vadd.f32 %v747, %v745
        %v749 = vadd.f32 %v748, %v746
        %v750 = vld [vmem:[%s605] sm:$0xff]
        %v751 = vld [vmem:[%s605 + $0x8] sm:$0xff]
        %v752 = vld [vmem:[%s605 + $0x10] sm:$0xff]
        %v753 = vld [vmem:[%s605 + $0x18] sm:$0xff]
        %v754 = vld [vmem:[%s605 + $0x20] sm:$0xff]
        %v755 = vld [vmem:[%s605 + $0x28] sm:$0xff]
        %v756 = vld [vmem:[%s605 + $0x30] sm:$0xff]
        %v757 = vld [vmem:[%s605 + $0x38] sm:$0xff]
        %v758 = vld [vmem:[%s605 + $0x40] sm:$0xff]
        %v759 = vld [vmem:[%s560] sm:$0xf]
        %v760 = vld [vmem:[%s560 + $0x4] sm:$0xf]
        %v761 = vld [vmem:[%s560 + $0x8] sm:$0xf]
        %v762 = vld [vmem:[%s560 + $0xc] sm:$0xf]
        %v763 = vld [vmem:[%s560 + $0x10] sm:$0xf]
        %v764 = vld [vmem:[%s560 + $0x14] sm:$0xf]
        %v765 = vld [vmem:[%s560 + $0x18] sm:$0xf]
        %v766 = vld [vmem:[%s560 + $0x1c] sm:$0xf]
        %v767 = vunpack.c.l.bf16 %v759
        %v768 = vunpack.c.l.bf16 %v760
        %v769 = vunpack.c.l.bf16 %v761
        %v770 = vunpack.c.l.bf16 %v762
        %v771 = vunpack.c.l.bf16 %v763
        %v772 = vunpack.c.l.bf16 %v764
        %v773 = vunpack.c.l.bf16 %v765
        %v774 = vunpack.c.l.bf16 %v766
        %v775 = vsub.f32 %v750, %v767
        %v776 = vsub.f32 %v751, %v768
        %v777 = vsub.f32 %v752, %v769
        %v778 = vsub.f32 %v753, %v770
        %v779 = vsub.f32 %v754, %v771
        %v780 = vsub.f32 %v755, %v772
        %v781 = vsub.f32 %v756, %v773
        %v782 = vsub.f32 %v757, %v774
        %v783 = vand.u32 2147483647, %v775
        %v784 = vand.u32 2147483647, %v776
        %v785 = vand.u32 2147483647, %v777
        %v786 = vand.u32 2147483647, %v778
        %v787 = vand.u32 2147483647, %v779
        %v788 = vand.u32 2147483647, %v780
        %v789 = vand.u32 2147483647, %v781
        %v790 = vand.u32 2147483647, %v782
        %vm791 = vcmp.lt.f32.partialorder %v783, 1.0
        %vm792 = vcmp.lt.f32.partialorder %v784, 1.0
        %vm793 = vcmp.lt.f32.partialorder %v785, 1.0
        %vm794 = vcmp.lt.f32.partialorder %v786, 1.0
        %vm795 = vcmp.lt.f32.partialorder %v787, 1.0
        %vm796 = vcmp.lt.f32.partialorder %v788, 1.0
        %vm797 = vcmp.lt.f32.partialorder %v789, 1.0
        %vm798 = vcmp.lt.f32.partialorder %v790, 1.0
        %v799 = vmul.f32 %v783, 0.5
        %v800 = vmul.f32 %v784, 0.5
        %v801 = vmul.f32 %v785, 0.5
        %v802 = vmul.f32 %v786, 0.5
        %v803 = vmul.f32 %v787, 0.5
        %v804 = vmul.f32 %v788, 0.5
        %v805 = vmul.f32 %v789, 0.5
        %v806 = vmul.f32 %v790, 0.5
        %v807 = vmul.f32 %v799, %v783
        %v808 = vmul.f32 %v800, %v784
        %v809 = vmul.f32 %v801, %v785
        %v810 = vmul.f32 %v802, %v786
        %v811 = vmul.f32 %v803, %v787
        %v812 = vmul.f32 %v804, %v788
        %v813 = vmul.f32 %v805, %v789
        %v814 = vmul.f32 %v806, %v790
        %v815 = vsub.f32 %v783, 0.5
        %v816 = vsub.f32 %v784, 0.5
        %v817 = vsub.f32 %v785, 0.5
        %v818 = vsub.f32 %v786, 0.5
        %v819 = vsub.f32 %v787, 0.5
        %v820 = vsub.f32 %v788, 0.5
        %v821 = vsub.f32 %v789, 0.5
        %v822 = vsub.f32 %v790, 0.5
        %v823 = vsel %vm791, %v807, %v815
        %v824 = vsel %vm792, %v808, %v816
        %v825 = vsel %vm793, %v809, %v817
        %v826 = vsel %vm794, %v810, %v818
        %v827 = vsel %vm795, %v811, %v819
        %v828 = vsel %vm796, %v812, %v820
        %v829 = vsel %vm797, %v813, %v821
        %v830 = vsel %vm798, %v814, %v822
        %v831 = vadd.f32 %v823, %v824
        %v832 = vadd.f32 %v831, %v825
        %v833 = vadd.f32 %v832, %v826
        %v834 = vadd.f32 %v833, %v827
        %v835 = vadd.f32 %v834, %v828
        %v836 = vadd.f32 %v835, %v829
        %v837 = vadd.f32 %v836, %v830
        %v838 = vld [vmem:[%s614] sm:$0xff]
        %v839 = vld [vmem:[%s614 + $0x8] sm:$0xff]
        %v840 = vld [vmem:[%s614 + $0x10] sm:$0xff]
        %v841 = vld [vmem:[%s569] sm:$0xf]
        %v842 = vld [vmem:[%s569 + $0x4] sm:$0xf]
        %v843 = vunpack.c.l.bf16 %v841
        %v844 = vunpack.c.l.bf16 %v842
        %v845 = vsub.f32 %v838, %v843
        %v846 = vsub.f32 %v839, %v844
        %v847 = vand.u32 2147483647, %v845
        %v848 = vand.u32 2147483647, %v846
        %vm849 = vcmp.lt.f32.partialorder %v847, 1.0
        %vm850 = vcmp.lt.f32.partialorder %v848, 1.0
        %v851 = vmul.f32 %v847, 0.5
        %v852 = vmul.f32 %v848, 0.5
        %v853 = vmul.f32 %v851, %v847
        %v854 = vmul.f32 %v852, %v848
        %v855 = vsub.f32 %v847, 0.5
        %v856 = vsub.f32 %v848, 0.5
        %v857 = vsel %vm849, %v853, %v855
        %v858 = vsel %vm850, %v854, %v856
        %v859 = vadd.f32 %v857, %v858
        %v860 = vld [vmem:[#allocation2] sm:$0xff]
        %v861 = vmul.f32 %v702, %v705
        %v862 = vadd.f32 %v860, %v861
        %863 = vst [vmem:[#allocation2] sm:$0xff] %v862
        %s864 = scalar_lea.vmem [#allocation2], 8
        %v865 = vld [vmem:[%s864] sm:$0xff]
        %v866 = vmul.f32 %v702, %v704
        %v867 = vadd.f32 %v865, %v866
        %868 = vst [vmem:[%s864] sm:$0xff] %v867
        %s869 = scalar_lea.vmem [#allocation2], 16
        %v870 = vld [vmem:[%s869] sm:$0xff]
        %v871 = vadd.f32 %v870, %v705
        %872 = vst [vmem:[%s869] sm:$0xff] %v871
        %s873 = scalar_lea.vmem [#allocation2], 24
        %v874 = vld [vmem:[%s873] sm:$0xff]
        %v875 = vmul.f32 %v705, %v710
        %v876 = vmul.f32 %v875, %v749
        %v877 = vadd.f32 %v874, %v876
        %878 = vst [vmem:[%s873] sm:$0xff] %v877
        %s879 = scalar_lea.vmem [#allocation2], 32
        %v880 = vld [vmem:[%s879] sm:$0xff]
        %v881 = vmul.f32 %v705, %v758
        %v882 = vmul.f32 %v881, %v837
        %v883 = vadd.f32 %v880, %v882
        %884 = vst [vmem:[%s879] sm:$0xff] %v883
        %s885 = scalar_lea.vmem [#allocation2], 40
        %v886 = vld [vmem:[%s885] sm:$0xff]
        %v887 = vmul.f32 %v705, %v840
        %v888 = vmul.f32 %v887, %v859
        %v889 = vadd.f32 %v886, %v888
        %890 = vst [vmem:[%s885] sm:$0xff] %v889
        // Predicated region
        $region97: #{tpu_custom_call.1} parent=55 // pred_check
          %p891 = pneg %p689
        $region98: #{tpu_custom_call.1} parent=55 // pred_check_branch
          %893 = sbr.rel (%p891) target = $region100
        $region99: #{tpu_custom_call.1} parent=55 // pred_region
          %v894 = vld [vmem:[#allocation2] sm:$0xff]
          %v895 = vld [vmem:[#allocation2 + $0x8] sm:$0xff]
          %v896 = vld [vmem:[#allocation2 + $0x10] sm:$0xff]
          %v897 = vld [vmem:[#allocation2 + $0x18] sm:$0xff]
          %v898 = vld [vmem:[#allocation2 + $0x20] sm:$0xff]
          %v899 = vld [vmem:[#allocation2 + $0x28] sm:$0xff]
          %v900 = vld [vmem:[#allocation2 + $0x30] sm:$0xff]
          %v901 = vld [vmem:[#allocation2 + $0x38] sm:$0xff]
          %v902 = vrot.slane %v894, 4
          %v903 = vadd.f32 %v894, %v902
          %v904 = vrot.slane %v903, 2
          %v905 = vadd.f32 %v903, %v904
          %v906 = vrot.slane %v905, 1
          %v907 = vadd.f32 %v905, %v906
          %v908 = vrot.slane %v895, 4
          %v909 = vadd.f32 %v895, %v908
          %v910 = vrot.slane %v909, 2
          %v911 = vadd.f32 %v909, %v910
          %v912 = vrot.slane %v911, 1
          %v913 = vadd.f32 %v911, %v912
          %v914 = vrot.slane %v896, 4
          %v915 = vadd.f32 %v896, %v914
          %v916 = vrot.slane %v915, 2
          %v917 = vadd.f32 %v915, %v916
          %v918 = vrot.slane %v917, 1
          %v919 = vadd.f32 %v917, %v918
          %v920 = vrot.slane %v897, 4
          %v921 = vadd.f32 %v897, %v920
          %v922 = vrot.slane %v921, 2
          %v923 = vadd.f32 %v921, %v922
          %v924 = vrot.slane %v923, 1
          %v925 = vadd.f32 %v923, %v924
          %v926 = vrot.slane %v898, 4
          %v927 = vadd.f32 %v898, %v926
          %v928 = vrot.slane %v927, 2
          %v929 = vadd.f32 %v927, %v928
          %v930 = vrot.slane %v929, 1
          %v931 = vadd.f32 %v929, %v930
          %v932 = vrot.slane %v899, 4
          %v933 = vadd.f32 %v899, %v932
          %v934 = vrot.slane %v933, 2
          %v935 = vadd.f32 %v933, %v934
          %v936 = vrot.slane %v935, 1
          %v937 = vadd.f32 %v935, %v936
          %v938 = vrot.slane %v900, 4
          %v939 = vadd.f32 %v900, %v938
          %v940 = vrot.slane %v939, 2
          %v941 = vadd.f32 %v939, %v940
          %v942 = vrot.slane %v941, 1
          %v943 = vadd.f32 %v941, %v942
          %v944 = vrot.slane %v901, 4
          %v945 = vadd.f32 %v901, %v944
          %v946 = vrot.slane %v945, 2
          %v947 = vadd.f32 %v945, %v946
          %v948 = vrot.slane %v947, 1
          %v949 = vadd.f32 %v947, %v948
          %vm958 = vcmask 1041409
          %v959 = vsel %vm958, %v913, %v907
          %vm960 = vcmask 1042434
          %v961 = vsel %vm960, %v919, %v959
          %vm962 = vcmask 1043459
          %v963 = vsel %vm962, %v925, %v961
          %vm964 = vcmask 1044484
          %v965 = vsel %vm964, %v931, %v963
          %vm966 = vcmask 1045509
          %v967 = vsel %vm966, %v937, %v965
          %vm968 = vcmask 1046534
          %v969 = vsel %vm968, %v943, %v967
          %vm970 = vcmask 1047559
          %v971 = vsel %vm970, %v949, %v969
          %973 = vst [vmem:[%s688] sm:$0xff] %v971
        $region100: #{tpu_custom_call.1} parent=55 // pred_fallthru
          _
        %s974 = sand.u32 %s310, 1
        %s975 = scalar_lea.sflag [#allocation5], %s974
        %s976 = sand.u32 %s310, 1
        %s977 = smul.addr %s976, 8
        %s978 = scalar_lea.vmem [#allocation18], %s977
        // Predicated region
        $region101: #{tpu_custom_call.1} parent=55 // pred_check
          %p979 = pneg %p320
        $region102: #{tpu_custom_call.1} parent=55 // pred_check_branch
          %981 = sbr.rel (%p979) target = $region104
        $region103: #{tpu_custom_call.1} parent=55 // pred_region
          %s983 = ssub.s32 128, 128
          %984 = vsyncadd %s975, %s983
          %s985 = smul.addr %s42, 128
          %s986 = scalar_lea.hbm %s9, %s985
          %s988 = sshll.u32 %s978, 4
          %s989 = int_to_ptr.vmem [resolvable:$true] %s988
          %991 = dma.vmem_to_hbm [thread:$0]  %s989, 128, %s986, %s975
        $region104: #{tpu_custom_call.1} parent=55 // pred_fallthru
          _
      $region56: #{tpu_custom_call.1} parent=5 // pred_fallthru
        _
      %p992 = scmp.le.s32.totalorder 2, %s33
      // Predicated region
      $region105: #{tpu_custom_call.1} parent=5 // pred_check
        %p993 = pneg %p992
      $region106: #{tpu_custom_call.1} parent=5 // pred_check_branch
        %995 = sbr.rel (%p993) target = $region108
      $region107: #{tpu_custom_call.1} parent=5 // pred_region
        %s996 = ssub.s32 %s33, 2
        // Predicated region
        $region109: #{tpu_custom_call.1} parent=107 // pred_check
          %p997 = pneg %p326
        $region110: #{tpu_custom_call.1} parent=107 // pred_check_branch
          %999 = sbr.rel (%p997) target = $region112
        $region111: #{tpu_custom_call.1} parent=107 // pred_region
          %s1000 = sand.u32 %s311, 1
          %s1001 = scalar_lea.sflag [#allocation5], %s1000
          %s1002 = sand.u32 %s311, 1
          %s1003 = smul.addr %s1002, 8
          %s1004 = scalar_lea.vmem [#allocation18], %s1003
          %1005 = dma.done %s1001, 128
        $region112: #{tpu_custom_call.1} parent=107 // pred_fallthru
          _
      $region108: #{tpu_custom_call.1} parent=5 // pred_fallthru
        _
    $region6: #{tpu_custom_call.1} parent=1 // loop_footer
      %s37 = sadd.s32 1, %s33
    $region7: #{tpu_custom_call.1} parent=1 // loop_footer_branch
      %32 = sbr.rel target = $region3
    $region8: #{tpu_custom_call.1} parent=1 // loop_exit
      _
    %1006 = vsyncpa [#allocation4], 1
    %s1007 = scalar_lea.sflag [#allocation4], 1
    %1008 = vsyncpa %s1007, 1
    %1009 = vsyncpa [#allocation7], 1
    %s1010 = scalar_lea.sflag [#allocation7], 1
    %1011 = vsyncpa %s1010, 1
    %1012 = vsyncpa [#allocation10], 1
    %s1013 = scalar_lea.sflag [#allocation10], 1
    %1014 = vsyncpa %s1013, 1
    %1015 = vsyncpa [#allocation13], 1
    %s1016 = scalar_lea.sflag [#allocation13], 1
    %1017 = vsyncpa %s1016, 1
    %1018 = vsyncpa [#allocation16], 1
    %s1019 = scalar_lea.sflag [#allocation16], 1
    %1020 = vsyncpa %s1019, 1
    %1021 = vsyncpa [#allocation5], 1
    %s1022 = scalar_lea.sflag [#allocation5], 1
    %1023 = vsyncpa %s1022, 1

</llo_original>
